<compile_context>
chip_gen: v6e
topology: v6e:2x2x1
jax: 0.10.0
libtpu: 0.0.40
codegen_flags: <defaults>
</compile_context>

<pallas_src>
import functools
import math

import jax
import jax.numpy as jnp
from jax import lax
from jax.experimental import pallas as pl
from jax.experimental.pallas import tpu as pltpu


_LANE = 128        # lane width of a vreg
_ROW_ALIGN = 32    # covers sublane packing for f32 (8) / bf16 (16) / int8 (32)


def _pos_enc_kernel(x_ref, inv_freq_ref, odd_ref, o_ref, *, rows_per_block):
    # x_ref / o_ref:  (rows, B*D) block of the flattened input/output
    # inv_freq_ref:   (1, B*D) f32, grid-invariant
    # odd_ref:        (1, B*D) i32 (1 on odd embed dims), grid-invariant
    r = x_ref.shape[0]

    # Global sequence position of each block row, shape (r, 1).  Rows of the
    # flattened [S, B*D] layout ARE positions, so this is O(r) work (not
    # O(r*L)) and exact in f32 (positions < max_len = 5000 << 2^24).
    pos = (
        lax.broadcasted_iota(jnp.int32, (r, 1), 0)
        + pl.program_id(0) * rows_per_block
    ).astype(jnp.float32)

    # (r,1) * (1,L) broadcasts to the dense (r, L) angle slab.
    angle = pos * inv_freq_ref[...]

    # Bit-exact even/odd selection: sin on even dims, cos on odd dims,
    # evaluated on the exact same angle as the PyTorch buffer construction
    # (no sin(angle + pi/2) fold, which drifts by ~ULP(angle) at large S).
    pe = jnp.where(odd_ref[...] != 0, jnp.cos(angle), jnp.sin(angle))

    # dropout(p=0.0) is the identity -> fused add, single cast to output dtype.
    o_ref[...] = (x_ref[...] + pe).astype(o_ref.dtype)


def _padded_row_bytes(n_lanes, itemsize):
    """VMEM bytes of one block row, including lane padding to 128."""
    return pl.cdiv(n_lanes, _LANE) * _LANE * itemsize


def _vmem_limit_bytes():
    """Generation-aware scoped-VMEM budget (v5e/v6e: 128 MiB physical, v7x: 64 MiB)."""
    try:
        cap = int(pltpu.get_tpu_info().vmem_capacity_bytes)
    except Exception:
        cap = 64 << 20  # conservative (v7x-sized) fallback
    return int(min(64 << 20, max(32 << 20, cap // 2)))


def _pick_row_tile(n_rows, row_bytes, vmem_limit):
    """Row tile (multiple of 32, or the full extent) for the [S, B*D] layout."""
    # 4 large buffers: 2x input + 2x output double-buffers at ~55% of the
    # scoped budget; the rest is headroom for the tiny grid-invariant inputs
    # and compiler temporaries.
    per_buffer_cap = (vmem_limit * 11 // 20) // 4
    r = max(_ROW_ALIGN,
            (per_buffer_cap // max(row_bytes, 1)) // _ROW_ALIGN * _ROW_ALIGN)
    if r >= n_rows:
        total_bytes = n_rows * row_bytes
        if total_bytes > (1 << 20) and n_rows >= 4 * _ROW_ALIGN:
            # Multi-MiB input that would otherwise be a single block: split
            # into ~4 steps so in-DMA / compute / out-DMA overlap.  Gated on
            # bytes, so tiny inputs stay single-step (no fixed per-step cost).
            r = pl.cdiv(pl.cdiv(n_rows, 4), _ROW_ALIGN) * _ROW_ALIGN
        else:
            r = n_rows
    return r


def _is_multi_tensorcore_chip():
    try:
        kind = jax.devices()[0].device_kind.lower()
    except Exception:
        return False
    return ("v7" in kind) or ("tpu7" in kind)


def positional_encoding(x, *, max_len=5000, donate_input=False):
    """x: [S, B, D] -> [S, B, D];  out = x + PE[:S]  (dropout p=0.0 == identity)."""
    S, B, D = x.shape
    # Matches the original module's check (strict <).
    assert S < max_len, "Too long sequence length: increase `max_len` of pos encoding"
    L = B * D

    # d-only PE ingredients, computed once in f32 exactly like the PyTorch
    # buffer construction:
    #   inv_freq[d] = exp((2*floor(d/2)) * -ln(10000)/D); even d -> sin, odd d -> cos.
    d_idx = jnp.arange(D, dtype=jnp.int32)
    inv_freq_d = jnp.exp(((d_idx // 2) * 2).astype(jnp.float32)
                         * jnp.float32(-math.log(10000.0) / D))
    odd_d = (d_idx % 2).astype(jnp.int32)
    # Lane vectors for the flattened [S, B*D] layout (lane j -> (b=j//D, d=j%D)).
    inv_freq = jnp.tile(inv_freq_d, B).reshape(1, L)
    odd = jnp.tile(odd_d, B).reshape(1, L)

    # Free row-major reshape: rows are positions, lanes are (batch, dim), so
    # the streamed blocks are fully sublane/lane dense for any B and D.
    x2 = x.reshape(S, L)

    vmem_limit = _vmem_limit_bytes()
    row_bytes = _padded_row_bytes(L, x.dtype.itemsize)
    r = _pick_row_tile(S, row_bytes, vmem_limit)
    # Make sure the chosen tiles (2x in + 2x out double-buffers) actually fit,
    # with headroom for the grid-invariant inputs / compiler temporaries.
    vmem_limit = int(min(128 << 20, max(vmem_limit, 4 * r * row_bytes + (8 << 20))))
    grid = (pl.cdiv(S, r),)

    kernel = functools.partial(_pos_enc_kernel, rows_per_block=r)

    def run(dim_sem):
        return pl.pallas_call(
            kernel,
            out_shape=jax.ShapeDtypeStruct((S, L), x.dtype),
            grid_spec=pltpu.PrefetchScalarGridSpec(
                num_scalar_prefetch=0,
                grid=grid,
                in_specs=[
                    # x: tile only the row (= position) axis; lanes stay full.
                    pl.BlockSpec((r, L), lambda i: (i, 0)),
                    # grid-invariant PE vectors: same block every step.
                    pl.BlockSpec((1, L), lambda i: (0, 0)),
                    pl.BlockSpec((1, L), lambda i: (0, 0)),
                ],
                out_specs=pl.BlockSpec((r, L), lambda i: (i, 0)),
            ),
            compiler_params=pltpu.CompilerParams(
                dimension_semantics=(dim_sem,),
                vmem_limit_bytes=vmem_limit,
            ),
            # Optional in-place add (caller must treat x as donated).
            input_output_aliases=({0: 0} if donate_input else {}),
        )(x2, inv_freq, odd)

    # v7x has 2 TensorCores per chip; sharding the row grid across them gives
    # up to ~2x HBM bandwidth for this streaming add.  Guarded + with a safe
    # fallback so single-core parts / older toolchains keep the known-good path.
    if grid[0] >= 2 and _is_multi_tensorcore_chip() and hasattr(pltpu, "CORE_PARALLEL"):
        try:
            out2 = run(pltpu.CORE_PARALLEL)
            jax.block_until_ready(out2)   # surface any Mosaic rejection here
            return out2.reshape(S, B, D)
        except Exception:
            pass                          # fall back to single-core semantics
    return run("parallel").reshape(S, B, D)


def _reference(x):
    """Pure-JAX reference mirroring the PyTorch buffer construction."""
    S, B, D = x.shape
    position = jnp.arange(S, dtype=jnp.float32)[:, None]                      # [S, 1]
    div_term = jnp.exp(jnp.arange(0, D, 2, dtype=jnp.float32)
                       * (-math.log(10000.0) / D))                            # [D/2]
    pe = jnp.zeros((S, D), jnp.float32)
    pe = pe.at[:, 0::2].set(jnp.sin(position * div_term))
    pe = pe.at[:, 1::2].set(jnp.cos(position * div_term))
    return x.astype(jnp.float32) + pe[:, None, :]                             # broadcast over batch


if __name__ == "__main__":
    keys = jax.random.split(jax.random.PRNGKey(0), 3)

    # Small shape implied by forward(): [seq, batch, embed].
    S, B, D = 8, 2, 32
    x = jax.random.normal(keys[0], (S, B, D), dtype=jnp.float32)
    out = jax.block_until_ready(positional_encoding(x))
    ref = _reference(x)
    assert out.shape == (S, B, D)
    assert jnp.allclose(out, ref, atol=1e-5, rtol=1e-5), "mismatch vs reference (small)"

    # Lane-dense shape (B*D = 512 lanes), single block.
    S2, B2, D2 = 64, 4, 128
    x_2 = jax.random.normal(keys[1], (S2, B2, D2), dtype=jnp.float32)
    out2 = jax.block_until_ready(positional_encoding(x_2))
    assert jnp.allclose(out2, _reference(x_2), atol=1e-5, rtol=1e-5), \
        "mismatch vs reference (dense)"

    # Multi-block grid (bytes-gated split into 4 row tiles) + bf16 I/O path.
    S3, B3, D3 = 384, 8, 256
    x_3 = jax.random.normal(keys[2], (S3, B3, D3), dtype=jnp.bfloat16)
    out3 = jax.block_until_ready(positional_encoding(x_3))
    assert out3.dtype == jnp.bfloat16
    assert jnp.allclose(out3.astype(jnp.float32), _reference(x_3),
                        atol=2e-2, rtol=2e-2), "mismatch vs reference (tiled, bf16)"

    print("KERNEL_OK")
</pallas_src>

<mosaic_0001>
module attributes {stable_mosaic.version = 11 : i64} {
  func.func @_pos_enc_kernel(%arg0: i32, %arg1: memref<8x64xf32, #tpu.memory_space<vmem>>, %arg2: memref<1x64xf32, #tpu.memory_space<vmem>>, %arg3: memref<1x64xi32, #tpu.memory_space<vmem>>, %arg4: memref<8x64xf32, #tpu.memory_space<vmem>>) attributes {dimension_semantics = [#tpu.dimension_semantics<parallel>], iteration_bounds = array<i64: 1>, scalar_prefetch = 0 : i64, scratch_operands = 0 : i64, tpu.core_type = #tpu.core_type<tc>, window_params = [{transform_indices = @transform_0, window_bounds = array<i64: 8, 64>}, {pipeline_mode = #tpu.pipeline_mode<synchronous>, transform_indices = @transform_1, window_bounds = array<i64: 1, 64>}, {pipeline_mode = #tpu.pipeline_mode<synchronous>, transform_indices = @transform_2, window_bounds = array<i64: 1, 64>}, {transform_indices = @transform_3, window_bounds = array<i64: 8, 64>}]} {
    %0 = tpu.iota {dimensions = array<i32: 0>} : vector<8x1xi32>
    %c8_i32 = arith.constant 8 : i32
    %1 = arith.muli %arg0, %c8_i32 : i32
    %2 = vector.broadcast %1 : i32 to vector<8x1xi32>
    %3 = arith.addi %0, %2 : vector<8x1xi32>
    %4 = arith.sitofp %3 : vector<8x1xi32> to vector<8x1xf32>
    %c0 = arith.constant 0 : index
    %c0_0 = arith.constant 0 : index
    %5 = vector.load %arg2[%c0, %c0_0] : memref<1x64xf32, #tpu.memory_space<vmem>>, vector<1x64xf32>
    %6 = vector.broadcast %4 : vector<8x1xf32> to vector<8x64xf32>
    %7 = vector.broadcast %5 : vector<1x64xf32> to vector<8x64xf32>
    %8 = arith.mulf %6, %7 : vector<8x64xf32>
    %c0_1 = arith.constant 0 : index
    %c0_2 = arith.constant 0 : index
    %9 = vector.load %arg3[%c0_1, %c0_2] : memref<1x64xi32, #tpu.memory_space<vmem>>, vector<1x64xi32>
    %c0_i32 = arith.constant 0 : i32
    %10 = vector.broadcast %c0_i32 : i32 to vector<1x64xi32>
    %11 = arith.cmpi ne, %9, %10 : vector<1x64xi32>
    %12 = math.cos %8 : vector<8x64xf32>
    %13 = math.sin %8 : vector<8x64xf32>
    %14 = vector.shape_cast %11 : vector<1x64xi1> to vector<1x64xi1>
    %15 = vector.broadcast %14 : vector<1x64xi1> to vector<8x64xi1>
    %16 = arith.select %15, %12, %13 : vector<8x64xi1>, vector<8x64xf32>
    %c0_3 = arith.constant 0 : index
    %c0_4 = arith.constant 0 : index
    %17 = vector.load %arg1[%c0_3, %c0_4] : memref<8x64xf32, #tpu.memory_space<vmem>>, vector<8x64xf32>
    %18 = arith.addf %17, %16 : vector<8x64xf32>
    %c0_5 = arith.constant 0 : index
    %c0_6 = arith.constant 0 : index
    %19 = vector.load %arg4[%c0_5, %c0_6] : memref<8x64xf32, #tpu.memory_space<vmem>>, vector<8x64xf32>
    tpu.vector_store %arg4[%c0_5, %c0_6], %18 {strides = array<i32>} : memref<8x64xf32, #tpu.memory_space<vmem>>, vector<8x64xf32>,
    return
  }
  func.func @transform_0(%arg0: i32) -> (i32, i32) {
    %c0_i32 = arith.constant 0 : i32
    %c0_i32_0 = arith.constant 0 : i32
    return %arg0, %c0_i32 : i32, i32
  }
  func.func @transform_1(%arg0: i32) -> (i32, i32) {
    %c0_i32 = arith.constant 0 : i32
    %c0_i32_0 = arith.constant 0 : i32
    %c0_i32_1 = arith.constant 0 : i32
    return %c0_i32, %c0_i32_0 : i32, i32
  }
  func.func @transform_2(%arg0: i32) -> (i32, i32) {
    %c0_i32 = arith.constant 0 : i32
    %c0_i32_0 = arith.constant 0 : i32
    %c0_i32_1 = arith.constant 0 : i32
    return %c0_i32, %c0_i32_0 : i32, i32
  }
  func.func @transform_3(%arg0: i32) -> (i32, i32) {
    %c0_i32 = arith.constant 0 : i32
    %c0_i32_0 = arith.constant 0 : i32
    return %arg0, %c0_i32 : i32, i32
  }
}

</mosaic_0001>

<llo_original>
// kernel: tpu_custom_call.1
$region0: #{tpu_custom_call.1}
  #allocation0 [shape = 'u32[]', space=smem, size = 0x4, offset = 0x4, fixed_abs, tag = 'smem constant byte address 0x4 - core index']
  #allocation1 [shape = 'u32[144,128]{1,0:T(1,128)}', space=vmem, size = 0x12000, scoped, tag = 'internal scratch']
  %s0 = inlined_call_operand.hbm [shape: f32[8,64], index: 0, kind: input, shape index: {}]
  %s1 = inlined_call_operand.vmem [shape: f32[1,64], index: 1, kind: input, shape index: {}]
  %s2 = inlined_call_operand.vmem [shape: s32[1,64], index: 2, kind: input, shape index: {}]
  %s3 = inlined_call_operand.hbm [shape: f32[8,64], index: 3, kind: output, shape index: {}]
  %s4 = sld [smem:[#allocation0]]
  $region26: #{tpu_custom_call.1} parent=0
    _
  %s6 = ssub.s32 1, %s4
  %s7 = scalar_select 0, %s6, %s4
  $region1: #{tpu_custom_call.1} parent=0
    #allocation2 [shape = 'u8[4096]{0}', space=vmem, size = 0x1000, scoped, tag = 'input window, operand 0, single buffered']
    #allocation3 [shape = 's32[1]{0}', space=sflag, size = 0x4, scoped, tag = 'scoped memory for tpu_custom_call.1']
    #allocation4 [shape = 's32[1]{0}', space=sflag, size = 0x4, scoped, tag = 'scoped memory for tpu_custom_call.1']
    #allocation5 [shape = 'u8[4096]{0}', space=vmem, size = 0x1000, scoped, tag = 'output window, operand 0, single buffered']
    %8 = vsyncpa [#allocation3], 0
    %9 = vsyncpa [#allocation4], 0
    // Predicated region
    $region2: #{tpu_custom_call.1} parent=1 // pred_check
      _
    $region3: #{tpu_custom_call.1} parent=1 // pred_check_branch
      %11 = sbr.rel (0) target = $region5
    $region4: #{tpu_custom_call.1} parent=1 // pred_region
      %s13 = ssub.s32 128, 128
      %14 = vsyncadd [#allocation3], %s13
      %s16 = sshll.u32 [#allocation2], 4
      %s17 = int_to_ptr.vmem [resolvable:$true] %s16
      %19 = dma.hbm_to_vmem [thread:$0]  %s0, 128, %s17, [#allocation3]
    $region5: #{tpu_custom_call.1} parent=1 // pred_fallthru
      _
    // Predicated region
    $region6: #{tpu_custom_call.1} parent=1 // pred_check
      _
    $region7: #{tpu_custom_call.1} parent=1 // pred_check_branch
      %21 = sbr.rel (0) target = $region9
    $region8: #{tpu_custom_call.1} parent=1 // pred_region
      _
    $region9: #{tpu_custom_call.1} parent=1 // pred_fallthru
      _
    // Predicated region
    $region10: #{tpu_custom_call.1} parent=1 // pred_check
      _
    $region11: #{tpu_custom_call.1} parent=1 // pred_check_branch
      %23 = sbr.rel (0) target = $region13
    $region12: #{tpu_custom_call.1} parent=1 // pred_region
      _
    $region13: #{tpu_custom_call.1} parent=1 // pred_fallthru
      _
    // Predicated region
    $region14: #{tpu_custom_call.1} parent=1 // pred_check
      _
    $region15: #{tpu_custom_call.1} parent=1 // pred_check_branch
      %25 = sbr.rel (0) target = $region17
    $region16: #{tpu_custom_call.1} parent=1 // pred_region
      %26 = dma.done [#allocation3], 128
    $region17: #{tpu_custom_call.1} parent=1 // pred_fallthru
      _
    %v27 = vlaneseq
    %v28 = vshrl.u32 %v27, 7
    %s29 = smul.u32 0, 8
    %v30 = vstv %s29
    %v31 = vadd.s32 %v28, %v30
    %v32 = vcvt.s32.f32 %v31
    %v33 = vld [vmem:[%s1] sm:$0x1]
    %v35 = vlaneseq
    %v36 = vshrl.u32 %v35, 7
    %v37 = vsub.s32 0, %v36
    %v38 = vrot.slane %v33, %v37
    %v40 = vmul.f32 %v32, %v38
    %v41 = vld [vmem:[%s2] sm:$0x1]
    %vm42 = vcmp.ne.s32.totalorder %v41, 0
    %v43 = vand.u32 2147483647, %v40
    %vm44 = vcmp.le.f32.partialorder %v43, 0.7853982
    %vm45 = vcmp.lt.s32.totalorder %v40, 0
    %v46 = vand.u32 %v40, 2139095040
    %v47 = vshrl.u32 %v46, 23
    %v48 = vsub.s32 %v47, 127
    %v49 = vand.u32 2147483647, %v40
    %v50 = vand.u32 %v49, 8388607
    %v51 = vor.u32 %v50, 8388608
    %v52 = vsub.s32 0, %v51
    %v53 = vadd.s32 %v48, 1
    %vm54 = vcmp.gt.s32.totalorder %v53, 0
    %v55 = vsel %vm54, %v53, 0
    %v56 = vshrl.u32 %v55, 5
    %v57 = vand.u32 %v55, 31
    %v58 = vsub.s32 32, %v57
    %v59 = vshrl.u32 683565275, %v58
    %v60 = vshll.u32 683565275, %v57
    %v61 = vshrl.u32 2475754826, %v58
    %v62 = vor.u32 %v60, %v61
    %v63 = vshll.u32 2475754826, %v57
    %v64 = vshrl.u32 2131351028, %v58
    %v65 = vor.u32 %v63, %v64
    %v66 = vshll.u32 2131351028, %v57
    %v67 = vshrl.u32 2102212464, %v58
    %v68 = vor.u32 %v66, %v67
    %v69 = vshll.u32 2102212464, %v57
    %v70 = vshrl.u32 920167782, %v58
    %v71 = vor.u32 %v69, %v70
    %v72 = vshll.u32 920167782, %v57
    %v73 = vshrl.u32 1326507024, %v58
    %v74 = vor.u32 %v72, %v73
    %vm75 = vcmp.lt.s32.totalorder %v56, 1
    %vm76 = vcmp.lt.s32.totalorder %v56, 2
    %vm77 = vcmp.lt.s32.totalorder %v56, 3
    %vm78 = vcmp.lt.s32.totalorder %v56, 4
    %v79 = vsel %vm75, %v59, %v62
    %v80 = vsel %vm78, %v68, 2102212464
    %v81 = vsel %vm77, %v65, %v80
    %v82 = vsel %vm76, %v79, %v81
    %v83 = vsel %vm75, %v62, %v65
    %v84 = vsel %vm78, %v71, 920167782
    %v85 = vsel %vm77, %v68, %v84
    %v86 = vsel %vm76, %v83, %v85
    %v87 = vsel %vm75, %v65, %v68
    %v88 = vsel %vm78, %v74, 1326507024
    %v89 = vsel %vm77, %v71, %v88
    %v90 = vsel %vm76, %v87, %v89
    %v91 = vshll.u32 %v51, 8
    %v92 = vmul.u32.u64.compose %v91, %v90
    %v93 = vextract.low.u32 %v92
    %v94 = vextract.high.u32 %v92
    %v95 = vmul.u32.u64.compose %v91, %v86
    %v96 = vextract.low.u32 %v95
    %v97 = vextract.high.u32 %v95
    %v98 = vmul.u32 %v91, %v82
    %v99 = vadd.s32 %v94, %v96
    %vm100 = vc.u32 %v94, %v96
    %v101 = vadd.s32 %v97, 1
    %v102 = vsel %vm100, %v101, %v97
    %v103 = vadd.s32 %v98, %v102
    %v104 = vadd.s32 %v103, 536870912
    %v105 = vshrl.u32 %v104, 30
    %v106 = vshll.u32 %v105, 30
    %v107 = vsub.s32 %v103, %v106
    %vm108 = vcmp.lt.s32.totalorder %v107, 0
    %v109 = vsub.s32 0, %v107
    %v110 = vsel %vm108, %v109, %v107
    %v111 = vclz %v110
    %v112 = vsub.s32 %v111, 2
    %vm113 = vcmp.gt.s32.totalorder 0, %v112
    %v114 = vsel %vm113, 0, %v112
    %v115 = vsub.s32 32, %v114
    %v116 = vshll.u32 %v107, %v114
    %v117 = vshrl.u32 %v99, %v115
    %v118 = vor.u32 %v116, %v117
    %v119 = vsub.s32 4294967266, %v114
    %v120 = vadd.s32 %v119, 127
    %v121 = vshll.u32 %v120, 23
    %v122 = vor.u32 4788187, %v121
    %v123 = vand.u32 2147483647, %v122
    %v125 = vcvt.s32.f32 %v118
    %v126 = vmul.f32 %v125, %v123
    %v127 = vxor.u32 %v126, 2147483648
    %v128 = vsel %vm45, %v127, %v126
    %v129 = vsub.s32 4, %v105
    %v130 = vsel %vm45, %v129, %v105
    %v131 = vsel %vm44, %v40, %v128
    %v132 = vsel %vm44, 0, %v130
    %v133 = vcosq.f32.pop %v131
    %v134 = vsinq.f32.pop %v131
    %vm135 = vweird.f32 %v40
    %v136 = vand.u32 %v132, 3
    %vm137 = vcmp.lt.s32.totalorder %v136, 2
    %vm138 = vcmp.eq.s32.totalorder %v136, 0
    %v139 = vxor.u32 %v134, 2147483648
    %v140 = vsel %vm138, %v133, %v139
    %vm141 = vcmp.eq.s32.totalorder %v136, 2
    %v142 = vxor.u32 %v133, 2147483648
    %v143 = vsel %vm141, %v142, %v134
    %v144 = vsel %vm137, %v140, %v143
    %v145 = vsel %vm135, nan, %v144
    %v146 = vand.u32 2147483647, %v40
    %vm147 = vcmp.le.f32.partialorder %v146, 0.7853982
    %vm148 = vcmp.lt.s32.totalorder %v40, 0
    %v149 = vand.u32 %v40, 2139095040
    %v150 = vshrl.u32 %v149, 23
    %v151 = vsub.s32 %v150, 127
    %v152 = vand.u32 2147483647, %v40
    %v153 = vand.u32 %v152, 8388607
    %v154 = vor.u32 %v153, 8388608
    %v155 = vsub.s32 0, %v154
    %v156 = vadd.s32 %v151, 1
    %vm157 = vcmp.gt.s32.totalorder %v156, 0
    %v158 = vsel %vm157, %v156, 0
    %v159 = vshrl.u32 %v158, 5
    %v160 = vand.u32 %v158, 31
    %v161 = vsub.s32 32, %v160
    %v162 = vshrl.u32 683565275, %v161
    %v163 = vshll.u32 683565275, %v160
    %v164 = vshrl.u32 2475754826, %v161
    %v165 = vor.u32 %v163, %v164
    %v166 = vshll.u32 2475754826, %v160
    %v167 = vshrl.u32 2131351028, %v161
    %v168 = vor.u32 %v166, %v167
    %v169 = vshll.u32 2131351028, %v160
    %v170 = vshrl.u32 2102212464, %v161
    %v171 = vor.u32 %v169, %v170
    %v172 = vshll.u32 2102212464, %v160
    %v173 = vshrl.u32 920167782, %v161
    %v174 = vor.u32 %v172, %v173
    %v175 = vshll.u32 920167782, %v160
    %v176 = vshrl.u32 1326507024, %v161
    %v177 = vor.u32 %v175, %v176
    %vm178 = vcmp.lt.s32.totalorder %v159, 1
    %vm179 = vcmp.lt.s32.totalorder %v159, 2
    %vm180 = vcmp.lt.s32.totalorder %v159, 3
    %vm181 = vcmp.lt.s32.totalorder %v159, 4
    %v182 = vsel %vm178, %v162, %v165
    %v183 = vsel %vm181, %v171, 2102212464
    %v184 = vsel %vm180, %v168, %v183
    %v185 = vsel %vm179, %v182, %v184
    %v186 = vsel %vm178, %v165, %v168
    %v187 = vsel %vm181, %v174, 920167782
    %v188 = vsel %vm180, %v171, %v187
    %v189 = vsel %vm179, %v186, %v188
    %v190 = vsel %vm178, %v168, %v171
    %v191 = vsel %vm181, %v177, 1326507024
    %v192 = vsel %vm180, %v174, %v191
    %v193 = vsel %vm179, %v190, %v192
    %v194 = vshll.u32 %v154, 8
    %v195 = vmul.u32.u64.compose %v194, %v193
    %v196 = vextract.low.u32 %v195
    %v197 = vextract.high.u32 %v195
    %v198 = vmul.u32.u64.compose %v194, %v189
    %v199 = vextract.low.u32 %v198
    %v200 = vextract.high.u32 %v198
    %v201 = vmul.u32 %v194, %v185
    %v202 = vadd.s32 %v197, %v199
    %vm203 = vc.u32 %v197, %v199
    %v204 = vadd.s32 %v200, 1
    %v205 = vsel %vm203, %v204, %v200
    %v206 = vadd.s32 %v201, %v205
    %v207 = vadd.s32 %v206, 536870912
    %v208 = vshrl.u32 %v207, 30
    %v209 = vshll.u32 %v208, 30
    %v210 = vsub.s32 %v206, %v209
    %vm211 = vcmp.lt.s32.totalorder %v210, 0
    %v212 = vsub.s32 0, %v210
    %v213 = vsel %vm211, %v212, %v210
    %v214 = vclz %v213
    %v215 = vsub.s32 %v214, 2
    %vm216 = vcmp.gt.s32.totalorder 0, %v215
    %v217 = vsel %vm216, 0, %v215
    %v218 = vsub.s32 32, %v217
    %v219 = vshll.u32 %v210, %v217
    %v220 = vshrl.u32 %v202, %v218
    %v221 = vor.u32 %v219, %v220
    %v222 = vsub.s32 4294967266, %v217
    %v223 = vadd.s32 %v222, 127
    %v224 = vshll.u32 %v223, 23
    %v225 = vor.u32 4788187, %v224
    %v226 = vand.u32 2147483647, %v225
    %v228 = vcvt.s32.f32 %v221
    %v229 = vmul.f32 %v228, %v226
    %v230 = vxor.u32 %v229, 2147483648
    %v231 = vsel %vm148, %v230, %v229
    %v232 = vsub.s32 4, %v208
    %v233 = vsel %vm148, %v232, %v208
    %v234 = vsel %vm147, %v40, %v231
    %v235 = vsel %vm147, 0, %v233
    %v236 = vcosq.f32.pop %v234
    %v237 = vsinq.f32.pop %v234
    %vm238 = vweird.f32 %v40
    %v239 = vadd.s32 %v235, 3
    %v240 = vand.u32 %v239, 3
    %vm241 = vcmp.lt.s32.totalorder %v240, 2
    %vm242 = vcmp.eq.s32.totalorder %v240, 0
    %v243 = vxor.u32 %v237, 2147483648
    %v244 = vsel %vm242, %v236, %v243
    %vm245 = vcmp.eq.s32.totalorder %v240, 2
    %v246 = vxor.u32 %v236, 2147483648
    %v247 = vsel %vm245, %v246, %v237
    %v248 = vsel %vm241, %v244, %v247
    %v249 = vsel %vm238, nan, %v248
    %v250 = vsel %vm42, 1, 0
    %v251 = vlaneseq
    %v252 = vshrl.u32 %v251, 7
    %v253 = vsub.s32 0, %v252
    %v254 = vrot.slane %v250, %v253
    %vm255 = vcmp.eq.s32.totalorder %v254, 1
    %v256 = vsel %vm255, %v145, %v249
    %v257 = vld [vmem:[#allocation2] sm:$0xff]
    %v258 = vadd.f32 %v257, %v256
    %vm259 = vcmask 523264
    %260 = vst.msk [vmem:[#allocation5] sm:$0xff] %vm259, %v258
    // Predicated region
    $region18: #{tpu_custom_call.1} parent=1 // pred_check
      _
    $region19: #{tpu_custom_call.1} parent=1 // pred_check_branch
      %262 = sbr.rel (0) target = $region21
    $region20: #{tpu_custom_call.1} parent=1 // pred_region
      %s264 = ssub.s32 128, 128
      %265 = vsyncadd [#allocation4], %s264
      %s267 = sshll.u32 [#allocation5], 4
      %s268 = int_to_ptr.vmem [resolvable:$true] %s267
      %270 = dma.vmem_to_hbm [thread:$0]  %s268, 128, %s3, [#allocation4]
    $region21: #{tpu_custom_call.1} parent=1 // pred_fallthru
      _
    // Predicated region
    $region22: #{tpu_custom_call.1} parent=1 // pred_check
      _
    $region23: #{tpu_custom_call.1} parent=1 // pred_check_branch
      %272 = sbr.rel (0) target = $region25
    $region24: #{tpu_custom_call.1} parent=1 // pred_region
      %273 = dma.done [#allocation4], 128
    $region25: #{tpu_custom_call.1} parent=1 // pred_fallthru
      _
    %274 = vsyncpa [#allocation3], 1
    %275 = vsyncpa [#allocation4], 1

</llo_original>
